<compile_context>
chip_gen: v5e
topology: v5e:2x2
jax: 0.10.0
libtpu: 0.0.40
codegen_flags: <defaults>
</compile_context>

<pallas_src>
import jax
import jax.numpy as jnp
from jax.experimental import pallas as pl
from jax.experimental.pallas import tpu as pltpu

HIDDEN = 768  # BERT hidden size, fixed by the module (nn.Linear(768, vocab_size))


def _round_up(x, m):
    return (x + m - 1) // m * m


def _token_classifier_kernel(enc_ref, w_ref, b_ref, logits_ref, yhat_ref):
    # enc_ref:    (tm, HIDDEN)  bf16, one tile of flattened tokens
    # w_ref:      (HIDDEN, V)   bf16, fc.weight.T (resident across grid)
    # b_ref:      (1, V)        f32,  fc.bias
    # logits_ref: (tm, V)       f32
    # yhat_ref:   (tm, 1)       int32 argmax indices
    logits = jnp.dot(enc_ref[...], w_ref[...], preferred_element_type=jnp.float32)
    logits = logits + b_ref[...]
    logits_ref[...] = logits.astype(logits_ref.dtype)

    # argmax over last dim, first-occurrence on ties (matches torch.argmax)
    v = logits.shape[-1]
    col = jax.lax.broadcasted_iota(jnp.int32, logits.shape, 1)
    row_max = jnp.max(logits, axis=-1, keepdims=True)
    first_max_idx = jnp.min(
        jnp.where(logits == row_max, col, jnp.int32(v)), axis=-1, keepdims=True
    )
    yhat_ref[...] = first_max_idx.astype(jnp.int32)


def _pick_tile(bs, *, cap=2048, min_steps=4):
    """Token-tile size: >= min_steps grid steps when possible, multiple of 16, <= cap."""
    target = -(-bs // min_steps)                 # cdiv(bs, min_steps)
    tm = _round_up(max(target, 1), 16)           # 16 = bf16 sublane quantum
    tm = min(tm, cap)                            # VMEM / pipelining sweet spot
    tm = min(tm, _round_up(bs, 16))              # never larger than the token axis
    return max(tm, 16)


def token_classifier_fc_argmax(enc, w, b, *, tm=None):
    """enc: [B, S, 768] (bf16 preferred, f32 accepted), w: [768, V], b: [V]
    -> (logits [B,S,V] f32, y_hat [B,S] i32)."""
    B, S, H = enc.shape
    assert H == HIDDEN
    V = w.shape[-1]
    BS = B * S

    # No pad, no extra cast pass: feed bf16 enc directly (cast only if needed).
    enc2 = enc.reshape(BS, H)
    if enc2.dtype != jnp.bfloat16:
        enc2 = enc2.astype(jnp.bfloat16)
    w_bf = w if w.dtype == jnp.bfloat16 else w.astype(jnp.bfloat16)
    b2 = b.reshape(1, V).astype(jnp.float32)

    if tm is None:
        tm = _pick_tile(BS)
    else:
        tm = max(16, _round_up(tm, 16))

    grid = (pl.cdiv(BS, tm),)  # ragged boundary block handled by Pallas (no jnp.pad)

    # Advisory cost estimate for XLA scheduling around the custom call.
    bytes_accessed = (
        BS * H * 2      # enc (bf16)
        + H * V * 2     # weight (bf16)
        + V * 4         # bias
        + BS * V * 4    # logits out
        + BS * 4        # y_hat out
    )
    cost = pl.CostEstimate(
        flops=2 * BS * H * V, transcendentals=0, bytes_accessed=bytes_accessed
    )

    # ~2x the actual double-buffered footprint (lane-padded VMEM sizes), with a
    # small floor for internal scratch; well under every generation's physical VMEM.
    lane_v = _round_up(V, 128)
    vmem_need = 2 * (
        tm * H * 2            # enc tile (bf16)
        + tm * lane_v * 4     # logits tile (f32, lane-padded)
        + tm * 128 * 4        # y_hat tile (i32, last dim padded to 128 lanes)
        + H * lane_v * 2      # resident weight
        + 8 * lane_v * 4      # bias
    )
    vmem_limit = int(min(max(2 * vmem_need, 8 << 20), 96 << 20))

    logits2, yhat2 = pl.pallas_call(
        _token_classifier_kernel,
        out_shape=(
            jax.ShapeDtypeStruct((BS, V), jnp.float32),
            jax.ShapeDtypeStruct((BS, 1), jnp.int32),
        ),
        grid_spec=pltpu.PrefetchScalarGridSpec(
            num_scalar_prefetch=0,
            grid=grid,
            in_specs=[
                pl.BlockSpec((tm, H), lambda i: (i, 0)),
                pl.BlockSpec((H, V), lambda i: (0, 0)),
                pl.BlockSpec((1, V), lambda i: (0, 0)),
            ],
            out_specs=[
                pl.BlockSpec((tm, V), lambda i: (i, 0)),
                pl.BlockSpec((tm, 1), lambda i: (i, 0)),
            ],
        ),
        compiler_params=pltpu.CompilerParams(
            dimension_semantics=("parallel",),
            vmem_limit_bytes=vmem_limit,
        ),
        cost_estimate=cost,
    )(enc2, w_bf, b2)

    logits = logits2.reshape(B, S, V)
    y_hat = yhat2[:, 0].reshape(B, S)
    return logits, y_hat


def token_classifier_forward(x_ids, y, embed_table, fc_w, fc_b):
    """Mirrors Token_Classifier.forward(x, y) -> (logits, y, y_hat)."""
    # TODO(synk): the pretrained 'bert-swiss-lm' encoder has no in-script
    # equivalent; its last hidden layer is substituted by a deterministic
    # embedding lookup producing enc[B, S, 768] (plain-JAX glue). With a bf16
    # embed_table the gather already yields bf16, so the kernel wrapper adds
    # no extra cast pass over enc.
    # TODO(synk): for this standalone lookup path the gather itself could be
    # fused into the kernel (scalar-prefetch x_ids + pl.Element row gather),
    # eliminating the enc HBM round-trip; not done since a real BERT would
    # feed enc instead.
    enc = embed_table[x_ids]  # [B, S, 768]
    logits, y_hat = token_classifier_fc_argmax(enc, fc_w, fc_b)
    return logits, y, y_hat


if __name__ == "__main__":
    key = jax.random.PRNGKey(0)
    k_emb, k_w, k_b, k_x, k_y = jax.random.split(key, 5)

    # label2idx / idx2label -> vocab_size = len(label2idx)
    labels = [f"LBL_{i}" for i in range(16)]
    label2idx = {l: i for i, l in enumerate(labels)}
    idx2label = {i: l for l, i in label2idx.items()}
    vocab_size = len(label2idx)  # 16

    B, S = 2, 8
    token_vocab = 32

    # Deterministic parameter init (synthetic, no checkpoint). Model params are
    # cast to bf16 once at setup (not per forward call).
    embed_table_f32 = jax.random.normal(k_emb, (token_vocab, HIDDEN), jnp.float32) * 0.02
    fc_w_f32 = jax.random.normal(k_w, (HIDDEN, vocab_size), jnp.float32) * 0.02  # fc.weight.T
    fc_b = jax.random.normal(k_b, (vocab_size,), jnp.float32) * 0.02
    embed_table = embed_table_f32.astype(jnp.bfloat16)
    fc_w = fc_w_f32.astype(jnp.bfloat16)

    x_ids = jax.random.randint(k_x, (B, S), 0, token_vocab, jnp.int32)
    y = jax.random.randint(k_y, (B, S), 0, vocab_size, jnp.int32)

    logits, y_out, y_hat = token_classifier_forward(x_ids, y, embed_table, fc_w, fc_b)
    jax.block_until_ready((logits, y_out, y_hat))

    # Sanity checks.
    enc_bf = embed_table[x_ids]                                  # [B, S, 768] bf16
    # bf16-input / f32-accumulation reference (same numeric path as the kernel).
    logits_bf_ref = (
        jnp.dot(
            enc_bf.reshape(-1, HIDDEN),
            fc_w,
            preferred_element_type=jnp.float32,
        ).reshape(B, S, vocab_size)
        + fc_b
    )
    yhat_ref = jnp.argmax(logits_bf_ref, axis=-1).astype(jnp.int32)
    # Full-f32 reference (loose tolerance only checks bf16 cast error is tiny).
    logits_f32_ref = embed_table_f32[x_ids] @ fc_w_f32 + fc_b

    assert logits.shape == (B, S, vocab_size) and logits.dtype == jnp.float32
    assert y_hat.shape == (B, S) and y_hat.dtype == jnp.int32
    assert jnp.allclose(logits, logits_bf_ref, atol=1e-4, rtol=1e-4)
    assert jnp.allclose(logits, logits_f32_ref, atol=1e-3, rtol=1e-2)
    assert jnp.array_equal(y_hat, yhat_ref)
    assert jnp.array_equal(y_hat, jnp.argmax(logits, axis=-1).astype(jnp.int32))
    assert jnp.array_equal(y_out, y)

    print("KERNEL_OK")
</pallas_src>

<mosaic_0001>
module attributes {stable_mosaic.version = 11 : i64} {
  func.func @_token_classifier_kernel(%arg0: i32, %arg1: memref<16x768xbf16, #tpu.memory_space<vmem>>, %arg2: memref<768x16xbf16, #tpu.memory_space<vmem>>, %arg3: memref<1x16xf32, #tpu.memory_space<vmem>>, %arg4: memref<16x16xf32, #tpu.memory_space<vmem>>, %arg5: memref<16x1xi32, #tpu.memory_space<vmem>>) attributes {dimension_semantics = [#tpu.dimension_semantics<parallel>], iteration_bounds = array<i64: 1>, scalar_prefetch = 0 : i64, scratch_operands = 0 : i64, tpu.core_type = #tpu.core_type<tc>, window_params = [{transform_indices = @transform_0, window_bounds = array<i64: 16, 768>}, {pipeline_mode = #tpu.pipeline_mode<synchronous>, transform_indices = @transform_1, window_bounds = array<i64: 768, 16>}, {pipeline_mode = #tpu.pipeline_mode<synchronous>, transform_indices = @transform_2, window_bounds = array<i64: 1, 16>}, {transform_indices = @transform_3, window_bounds = array<i64: 16, 16>}, {transform_indices = @transform_4, window_bounds = array<i64: 16, 1>}]} {
    %c0 = arith.constant 0 : index
    %c0_0 = arith.constant 0 : index
    %0 = vector.load %arg1[%c0, %c0_0] : memref<16x768xbf16, #tpu.memory_space<vmem>>, vector<16x768xbf16>
    %c0_1 = arith.constant 0 : index
    %c0_2 = arith.constant 0 : index
    %1 = vector.load %arg2[%c0_1, %c0_2] : memref<768x16xbf16, #tpu.memory_space<vmem>>, vector<768x16xbf16>
    %cst = arith.constant dense<0.000000e+00> : vector<16x16xf32>
    %2 = tpu.matmul %0, %1, %cst {dimension_numbers = #tpu.dot_dimension_numbers<[1], [0], [0], [1], [0, 0, 1, 1], [], []>} : vector<16x768xbf16>, vector<768x16xbf16>, vector<16x16xf32> -> vector<16x16xf32>
    %c0_3 = arith.constant 0 : index
    %c0_4 = arith.constant 0 : index
    %3 = vector.load %arg3[%c0_3, %c0_4] : memref<1x16xf32, #tpu.memory_space<vmem>>, vector<1x16xf32>
    %4 = vector.broadcast %3 : vector<1x16xf32> to vector<16x16xf32>
    %5 = arith.addf %2, %4 : vector<16x16xf32>
    %c0_5 = arith.constant 0 : index
    %c0_6 = arith.constant 0 : index
    %6 = vector.load %arg4[%c0_5, %c0_6] : memref<16x16xf32, #tpu.memory_space<vmem>>, vector<16x16xf32>
    tpu.vector_store %arg4[%c0_5, %c0_6], %5 {strides = array<i32>} : memref<16x16xf32, #tpu.memory_space<vmem>>, vector<16x16xf32>,
    %7 = tpu.iota {dimensions = array<i32: 1>} : vector<16x16xi32>
    %cst_7 = arith.constant dense<0xFF800000> : vector<16xf32>
    %8 = vector.multi_reduction <maximumf>, %5, %cst_7 [1] : vector<16x16xf32> to vector<16xf32>
    %9 = vector.shape_cast %8 : vector<16xf32> to vector<16x1xf32>
    %10 = vector.broadcast %9 : vector<16x1xf32> to vector<16x16xf32>
    %11 = arith.cmpf oeq, %5, %10 : vector<16x16xf32>
    %c16_i32 = arith.constant 16 : i32
    %12 = vector.broadcast %c16_i32 : i32 to vector<16x16xi32>
    %13 = arith.select %11, %7, %12 : vector<16x16xi1>, vector<16x16xi32>
    %cst_8 = arith.constant dense<2147483647> : vector<16xi32>
    %14 = vector.multi_reduction <minsi>, %13, %cst_8 [1] : vector<16x16xi32> to vector<16xi32>
    %15 = vector.shape_cast %14 : vector<16xi32> to vector<16x1xi32>
    %c0_9 = arith.constant 0 : index
    %c0_10 = arith.constant 0 : index
    %16 = vector.load %arg5[%c0_9, %c0_10] : memref<16x1xi32, #tpu.memory_space<vmem>>, vector<16x1xi32>
    tpu.vector_store %arg5[%c0_9, %c0_10], %15 {strides = array<i32>} : memref<16x1xi32, #tpu.memory_space<vmem>>, vector<16x1xi32>,
    return
  }
  func.func @transform_0(%arg0: i32) -> (i32, i32) {
    %c0_i32 = arith.constant 0 : i32
    %c0_i32_0 = arith.constant 0 : i32
    return %arg0, %c0_i32 : i32, i32
  }
  func.func @transform_1(%arg0: i32) -> (i32, i32) {
    %c0_i32 = arith.constant 0 : i32
    %c0_i32_0 = arith.constant 0 : i32
    %c0_i32_1 = arith.constant 0 : i32
    return %c0_i32, %c0_i32_0 : i32, i32
  }
  func.func @transform_2(%arg0: i32) -> (i32, i32) {
    %c0_i32 = arith.constant 0 : i32
    %c0_i32_0 = arith.constant 0 : i32
    %c0_i32_1 = arith.constant 0 : i32
    return %c0_i32, %c0_i32_0 : i32, i32
  }
  func.func @transform_3(%arg0: i32) -> (i32, i32) {
    %c0_i32 = arith.constant 0 : i32
    %c0_i32_0 = arith.constant 0 : i32
    return %arg0, %c0_i32 : i32, i32
  }
  func.func @transform_4(%arg0: i32) -> (i32, i32) {
    %c0_i32 = arith.constant 0 : i32
    %c0_i32_0 = arith.constant 0 : i32
    return %arg0, %c0_i32 : i32, i32
  }
}

</mosaic_0001>

<llo_original>
// kernel: tpu_custom_call.1
$region0: #{tpu_custom_call.1}
  #allocation0 [shape = 'u32[]', space=smem, size = 0x4, offset = 0x4, fixed_abs, tag = 'smem constant byte address 0x4 - core index']
  #allocation1 [shape = 'u32[72,128]{1,0:T(1,128)}', space=vmem, size = 0x9000, scoped, tag = 'internal scratch']
  %s0 = inlined_call_operand.vmem [shape: bf16[16,768], index: 0, kind: input, shape index: {}]
  %s1 = inlined_call_operand.vmem [shape: bf16[768,16], index: 1, kind: input, shape index: {}]
  %s2 = inlined_call_operand.vmem [shape: f32[1,16], index: 2, kind: input, shape index: {}]
  %s3 = inlined_call_operand.hbm [shape: f32[16,16], index: 3, kind: output, shape index: {0}]
  %s4 = inlined_call_operand.vmem [shape: s32[16,1], index: 4, kind: output, shape index: {1}]
  %5 = xla_tuple %s3, %s4
  %s6 = sld [smem:[#allocation0]]
  $region30: #{tpu_custom_call.1} parent=0
    _
  %s8 = ssub.s32 1, %s6
  %s9 = scalar_select 0, %s8, %s6
  $region1: #{tpu_custom_call.1} parent=0
    #allocation2 [shape = 'u8[8192]{0}', space=vmem, size = 0x2000, scoped, tag = 'output window, operand 0, single buffered']
    #allocation3 [shape = 's32[1]{0}', space=sflag, size = 0x4, scoped, tag = 'scoped memory for tpu_custom_call.1']
    %10 = vsyncpa [#allocation3], 0
    // Predicated region
    $region2: #{tpu_custom_call.1} parent=1 // pred_check
      _
    $region3: #{tpu_custom_call.1} parent=1 // pred_check_branch
      %12 = sbr.rel (0) target = $region5
    $region4: #{tpu_custom_call.1} parent=1 // pred_region
      _
    $region5: #{tpu_custom_call.1} parent=1 // pred_fallthru
      _
    // Predicated region
    $region6: #{tpu_custom_call.1} parent=1 // pred_check
      _
    $region7: #{tpu_custom_call.1} parent=1 // pred_check_branch
      %14 = sbr.rel (0) target = $region9
    $region8: #{tpu_custom_call.1} parent=1 // pred_region
      _
    $region9: #{tpu_custom_call.1} parent=1 // pred_fallthru
      _
    // Predicated region
    $region10: #{tpu_custom_call.1} parent=1 // pred_check
      _
    $region11: #{tpu_custom_call.1} parent=1 // pred_check_branch
      %16 = sbr.rel (0) target = $region13
    $region12: #{tpu_custom_call.1} parent=1 // pred_region
      _
    $region13: #{tpu_custom_call.1} parent=1 // pred_fallthru
      _
    %v17 = vld [vmem:[%s0] sm:$0xff]
    %v18 = vld [vmem:[%s0 + $0x8] sm:$0xff]
    %v19 = vld [vmem:[%s0 + $0x10] sm:$0xff]
    %v20 = vld [vmem:[%s0 + $0x18] sm:$0xff]
    %v21 = vld [vmem:[%s0 + $0x20] sm:$0xff]
    %v22 = vld [vmem:[%s0 + $0x28] sm:$0xff]
    %v23 = vld [vmem:[%s1] sm:$0xf]
    %v24 = vld [vmem:[%s1 + $0x4] sm:$0xf]
    %v25 = vld [vmem:[%s1 + $0x8] sm:$0xf]
    %v26 = vld [vmem:[%s1 + $0xc] sm:$0xf]
    %v27 = vld [vmem:[%s1 + $0x10] sm:$0xf]
    %v28 = vld [vmem:[%s1 + $0x14] sm:$0xf]
    %v29 = vld [vmem:[%s1 + $0x18] sm:$0xf]
    %v30 = vld [vmem:[%s1 + $0x1c] sm:$0xf]
    %v31 = vld [vmem:[%s1 + $0x20] sm:$0xf]
    %v32 = vld [vmem:[%s1 + $0x24] sm:$0xf]
    %v33 = vld [vmem:[%s1 + $0x28] sm:$0xf]
    %v34 = vld [vmem:[%s1 + $0x2c] sm:$0xf]
    %v35 = vld [vmem:[%s1 + $0x30] sm:$0xf]
    %v36 = vld [vmem:[%s1 + $0x34] sm:$0xf]
    %v37 = vld [vmem:[%s1 + $0x38] sm:$0xf]
    %v38 = vld [vmem:[%s1 + $0x3c] sm:$0xf]
    %v39 = vld [vmem:[%s1 + $0x40] sm:$0xf]
    %v40 = vld [vmem:[%s1 + $0x44] sm:$0xf]
    %v41 = vld [vmem:[%s1 + $0x48] sm:$0xf]
    %v42 = vld [vmem:[%s1 + $0x4c] sm:$0xf]
    %v43 = vld [vmem:[%s1 + $0x50] sm:$0xf]
    %v44 = vld [vmem:[%s1 + $0x54] sm:$0xf]
    %v45 = vld [vmem:[%s1 + $0x58] sm:$0xf]
    %v46 = vld [vmem:[%s1 + $0x5c] sm:$0xf]
    %v47 = vld [vmem:[%s1 + $0x60] sm:$0xf]
    %v48 = vld [vmem:[%s1 + $0x64] sm:$0xf]
    %v49 = vld [vmem:[%s1 + $0x68] sm:$0xf]
    %v50 = vld [vmem:[%s1 + $0x6c] sm:$0xf]
    %v51 = vld [vmem:[%s1 + $0x70] sm:$0xf]
    %v52 = vld [vmem:[%s1 + $0x74] sm:$0xf]
    %v53 = vld [vmem:[%s1 + $0x78] sm:$0xf]
    %v54 = vld [vmem:[%s1 + $0x7c] sm:$0xf]
    %v55 = vld [vmem:[%s1 + $0x80] sm:$0xf]
    %v56 = vld [vmem:[%s1 + $0x84] sm:$0xf]
    %v57 = vld [vmem:[%s1 + $0x88] sm:$0xf]
    %v58 = vld [vmem:[%s1 + $0x8c] sm:$0xf]
    %v59 = vld [vmem:[%s1 + $0x90] sm:$0xf]
    %v60 = vld [vmem:[%s1 + $0x94] sm:$0xf]
    %v61 = vld [vmem:[%s1 + $0x98] sm:$0xf]
    %v62 = vld [vmem:[%s1 + $0x9c] sm:$0xf]
    %v63 = vld [vmem:[%s1 + $0xa0] sm:$0xf]
    %v64 = vld [vmem:[%s1 + $0xa4] sm:$0xf]
    %v65 = vld [vmem:[%s1 + $0xa8] sm:$0xf]
    %v66 = vld [vmem:[%s1 + $0xac] sm:$0xf]
    %v67 = vld [vmem:[%s1 + $0xb0] sm:$0xf]
    %v68 = vld [vmem:[%s1 + $0xb4] sm:$0xf]
    %v69 = vld [vmem:[%s1 + $0xb8] sm:$0xf]
    %v70 = vld [vmem:[%s1 + $0xbc] sm:$0xf]
    %v71 = vld [vmem:[%s1 + $0xc0] sm:$0xf]
    %v72 = vld [vmem:[%s1 + $0xc4] sm:$0xf]
    %v73 = vld [vmem:[%s1 + $0xc8] sm:$0xf]
    %v74 = vld [vmem:[%s1 + $0xcc] sm:$0xf]
    %v75 = vld [vmem:[%s1 + $0xd0] sm:$0xf]
    %v76 = vld [vmem:[%s1 + $0xd4] sm:$0xf]
    %v77 = vld [vmem:[%s1 + $0xd8] sm:$0xf]
    %v78 = vld [vmem:[%s1 + $0xdc] sm:$0xf]
    %v79 = vld [vmem:[%s1 + $0xe0] sm:$0xf]
    %v80 = vld [vmem:[%s1 + $0xe4] sm:$0xf]
    %v81 = vld [vmem:[%s1 + $0xe8] sm:$0xf]
    %v82 = vld [vmem:[%s1 + $0xec] sm:$0xf]
    %v83 = vld [vmem:[%s1 + $0xf0] sm:$0xf]
    %v84 = vld [vmem:[%s1 + $0xf4] sm:$0xf]
    %v85 = vld [vmem:[%s1 + $0xf8] sm:$0xf]
    %v86 = vld [vmem:[%s1 + $0xfc] sm:$0xf]
    %v87 = vld [vmem:[%s1 + $0x100] sm:$0xf]
    %v88 = vld [vmem:[%s1 + $0x104] sm:$0xf]
    %v89 = vld [vmem:[%s1 + $0x108] sm:$0xf]
    %v90 = vld [vmem:[%s1 + $0x10c] sm:$0xf]
    %v91 = vld [vmem:[%s1 + $0x110] sm:$0xf]
    %v92 = vld [vmem:[%s1 + $0x114] sm:$0xf]
    %v93 = vld [vmem:[%s1 + $0x118] sm:$0xf]
    %v94 = vld [vmem:[%s1 + $0x11c] sm:$0xf]
    %v95 = vld [vmem:[%s1 + $0x120] sm:$0xf]
    %v96 = vld [vmem:[%s1 + $0x124] sm:$0xf]
    %v97 = vld [vmem:[%s1 + $0x128] sm:$0xf]
    %v98 = vld [vmem:[%s1 + $0x12c] sm:$0xf]
    %v99 = vld [vmem:[%s1 + $0x130] sm:$0xf]
    %v100 = vld [vmem:[%s1 + $0x134] sm:$0xf]
    %v101 = vld [vmem:[%s1 + $0x138] sm:$0xf]
    %v102 = vld [vmem:[%s1 + $0x13c] sm:$0xf]
    %v103 = vld [vmem:[%s1 + $0x140] sm:$0xf]
    %v104 = vld [vmem:[%s1 + $0x144] sm:$0xf]
    %v105 = vld [vmem:[%s1 + $0x148] sm:$0xf]
    %v106 = vld [vmem:[%s1 + $0x14c] sm:$0xf]
    %v107 = vld [vmem:[%s1 + $0x150] sm:$0xf]
    %v108 = vld [vmem:[%s1 + $0x154] sm:$0xf]
    %v109 = vld [vmem:[%s1 + $0x158] sm:$0xf]
    %v110 = vld [vmem:[%s1 + $0x15c] sm:$0xf]
    %v111 = vld [vmem:[%s1 + $0x160] sm:$0xf]
    %v112 = vld [vmem:[%s1 + $0x164] sm:$0xf]
    %v113 = vld [vmem:[%s1 + $0x168] sm:$0xf]
    %v114 = vld [vmem:[%s1 + $0x16c] sm:$0xf]
    %v115 = vld [vmem:[%s1 + $0x170] sm:$0xf]
    %v116 = vld [vmem:[%s1 + $0x174] sm:$0xf]
    %v117 = vld [vmem:[%s1 + $0x178] sm:$0xf]
    %v118 = vld [vmem:[%s1 + $0x17c] sm:$0xf]
    %v119 = vld [vmem:[%s2] sm:$0x1]
    %v121 = vperm.slane %v119, 0
    %v129 = vunpack.c.l.b16 %v17
    %v130 = vunpack.c.h.b16 %v17
    %v131 = vunpack.c.l.b16 %v18
    %v132 = vunpack.c.h.b16 %v18
    %v133 = vunpack.c.l.b16 %v19
    %v134 = vunpack.c.h.b16 %v19
    %v135 = vunpack.c.l.b16 %v20
    %v136 = vunpack.c.h.b16 %v20
    %v137 = vunpack.c.l.b16 %v21
    %v138 = vunpack.c.h.b16 %v21
    %v139 = vunpack.c.l.b16 %v22
    %v140 = vunpack.c.h.b16 %v22
    %v141 = vpack.c.b16 %v135, %v129
    %v142 = vpack.c.b16 %v136, %v130
    %v143 = vpack.c.b16 %v137, %v131
    %v144 = vpack.c.b16 %v138, %v132
    %v145 = vpack.c.b16 %v139, %v133
    %v146 = vpack.c.b16 %v140, %v134
    %v249 = vunpack.c.l.b16 %v23
    %v250 = vunpack.c.l.b16 %v24
    %v251 = vunpack.c.l.b16 %v25
    %v252 = vunpack.c.l.b16 %v26
    %v253 = vunpack.c.l.b16 %v27
    %v254 = vunpack.c.l.b16 %v28
    %v255 = vunpack.c.l.b16 %v29
    %v256 = vunpack.c.l.b16 %v30
    %v257 = vunpack.c.l.b16 %v31
    %v258 = vunpack.c.l.b16 %v32
    %v259 = vunpack.c.l.b16 %v33
    %v260 = vunpack.c.l.b16 %v34
    %v261 = vunpack.c.l.b16 %v35
    %v262 = vunpack.c.l.b16 %v36
    %v263 = vunpack.c.l.b16 %v37
    %v264 = vunpack.c.l.b16 %v38
    %v265 = vunpack.c.l.b16 %v39
    %v266 = vunpack.c.l.b16 %v40
    %v267 = vunpack.c.l.b16 %v41
    %v268 = vunpack.c.l.b16 %v42
    %v269 = vunpack.c.l.b16 %v43
    %v270 = vunpack.c.l.b16 %v44
    %v271 = vunpack.c.l.b16 %v45
    %v272 = vunpack.c.l.b16 %v46
    %v273 = vunpack.c.l.b16 %v47
    %v274 = vunpack.c.l.b16 %v48
    %v275 = vunpack.c.l.b16 %v49
    %v276 = vunpack.c.l.b16 %v50
    %v277 = vunpack.c.l.b16 %v51
    %v278 = vunpack.c.l.b16 %v52
    %v279 = vunpack.c.l.b16 %v53
    %v280 = vunpack.c.l.b16 %v54
    %v281 = vunpack.c.l.b16 %v55
    %v282 = vunpack.c.l.b16 %v56
    %v283 = vunpack.c.l.b16 %v57
    %v284 = vunpack.c.l.b16 %v58
    %v285 = vunpack.c.l.b16 %v59
    %v286 = vunpack.c.l.b16 %v60
    %v287 = vunpack.c.l.b16 %v61
    %v288 = vunpack.c.l.b16 %v62
    %v289 = vunpack.c.l.b16 %v63
    %v290 = vunpack.c.l.b16 %v64
    %v291 = vunpack.c.l.b16 %v65
    %v292 = vunpack.c.l.b16 %v66
    %v293 = vunpack.c.l.b16 %v67
    %v294 = vunpack.c.l.b16 %v68
    %v295 = vunpack.c.l.b16 %v69
    %v296 = vunpack.c.l.b16 %v70
    %v297 = vunpack.c.l.b16 %v71
    %v298 = vunpack.c.l.b16 %v72
    %v299 = vunpack.c.l.b16 %v73
    %v300 = vunpack.c.l.b16 %v74
    %v301 = vunpack.c.l.b16 %v75
    %v302 = vunpack.c.l.b16 %v76
    %v303 = vunpack.c.l.b16 %v77
    %v304 = vunpack.c.l.b16 %v78
    %v305 = vunpack.c.l.b16 %v79
    %v306 = vunpack.c.l.b16 %v80
    %v307 = vunpack.c.l.b16 %v81
    %v308 = vunpack.c.l.b16 %v82
    %v309 = vunpack.c.l.b16 %v83
    %v310 = vunpack.c.l.b16 %v84
    %v311 = vunpack.c.l.b16 %v85
    %v312 = vunpack.c.l.b16 %v86
    %v313 = vunpack.c.l.b16 %v87
    %v314 = vunpack.c.l.b16 %v88
    %v315 = vunpack.c.l.b16 %v89
    %v316 = vunpack.c.l.b16 %v90
    %v317 = vunpack.c.l.b16 %v91
    %v318 = vunpack.c.l.b16 %v92
    %v319 = vunpack.c.l.b16 %v93
    %v320 = vunpack.c.l.b16 %v94
    %v321 = vunpack.c.l.b16 %v95
    %v322 = vunpack.c.l.b16 %v96
    %v323 = vunpack.c.l.b16 %v97
    %v324 = vunpack.c.l.b16 %v98
    %v325 = vunpack.c.l.b16 %v99
    %v326 = vunpack.c.l.b16 %v100
    %v327 = vunpack.c.l.b16 %v101
    %v328 = vunpack.c.l.b16 %v102
    %v329 = vunpack.c.l.b16 %v103
    %v330 = vunpack.c.l.b16 %v104
    %v331 = vunpack.c.l.b16 %v105
    %v332 = vunpack.c.l.b16 %v106
    %v333 = vunpack.c.l.b16 %v107
    %v334 = vunpack.c.l.b16 %v108
    %v335 = vunpack.c.l.b16 %v109
    %v336 = vunpack.c.l.b16 %v110
    %v337 = vunpack.c.l.b16 %v111
    %v338 = vunpack.c.l.b16 %v112
    %v339 = vunpack.c.l.b16 %v113
    %v340 = vunpack.c.l.b16 %v114
    %v341 = vunpack.c.l.b16 %v115
    %v342 = vunpack.c.l.b16 %v116
    %v343 = vunpack.c.l.b16 %v117
    %v344 = vunpack.c.l.b16 %v118
    %v345 = vpack.c.b16 %v250, %v249
    %v346 = vpack.c.b16 %v252, %v251
    %v347 = vpack.c.b16 %v254, %v253
    %v348 = vpack.c.b16 %v256, %v255
    %v349 = vpack.c.b16 %v258, %v257
    %v350 = vpack.c.b16 %v260, %v259
    %v351 = vpack.c.b16 %v262, %v261
    %v352 = vpack.c.b16 %v264, %v263
    %v353 = vpack.c.b16 %v266, %v265
    %v354 = vpack.c.b16 %v268, %v267
    %v355 = vpack.c.b16 %v270, %v269
    %v356 = vpack.c.b16 %v272, %v271
    %v357 = vpack.c.b16 %v274, %v273
    %v358 = vpack.c.b16 %v276, %v275
    %v359 = vpack.c.b16 %v278, %v277
    %v360 = vpack.c.b16 %v280, %v279
    %v361 = vpack.c.b16 %v282, %v281
    %v362 = vpack.c.b16 %v284, %v283
    %v363 = vpack.c.b16 %v286, %v285
    %v364 = vpack.c.b16 %v288, %v287
    %v365 = vpack.c.b16 %v290, %v289
    %v366 = vpack.c.b16 %v292, %v291
    %v367 = vpack.c.b16 %v294, %v293
    %v368 = vpack.c.b16 %v296, %v295
    %v369 = vpack.c.b16 %v298, %v297
    %v370 = vpack.c.b16 %v300, %v299
    %v371 = vpack.c.b16 %v302, %v301
    %v372 = vpack.c.b16 %v304, %v303
    %v373 = vpack.c.b16 %v306, %v305
    %v374 = vpack.c.b16 %v308, %v307
    %v375 = vpack.c.b16 %v310, %v309
    %v376 = vpack.c.b16 %v312, %v311
    %v377 = vpack.c.b16 %v314, %v313
    %v378 = vpack.c.b16 %v316, %v315
    %v379 = vpack.c.b16 %v318, %v317
    %v380 = vpack.c.b16 %v320, %v319
    %v381 = vpack.c.b16 %v322, %v321
    %v382 = vpack.c.b16 %v324, %v323
    %v383 = vpack.c.b16 %v326, %v325
    %v384 = vpack.c.b16 %v328, %v327
    %v385 = vpack.c.b16 %v330, %v329
    %v386 = vpack.c.b16 %v332, %v331
    %v387 = vpack.c.b16 %v334, %v333
    %v388 = vpack.c.b16 %v336, %v335
    %v389 = vpack.c.b16 %v338, %v337
    %v390 = vpack.c.b16 %v340, %v339
    %v391 = vpack.c.b16 %v342, %v341
    %v392 = vpack.c.b16 %v344, %v343
    %441 = vmatpush.bf16.msra.mxu0 %v352
    %442 = vmatpush.bf16.msra.mxu0 %v351
    %443 = vmatpush.bf16.msra.mxu0 %v350
    %444 = vmatpush.bf16.msra.mxu0 %v349
    %445 = vmatpush.bf16.msra.mxu0 %v348
    %446 = vmatpush.bf16.msra.mxu0 %v347
    %447 = vmatpush.bf16.msra.mxu0 %v346
    %448 = vmatpush.bf16.msra.mxu0 %v345
    %449 = vmatmul.bf16.gmra.mxu0 %v141
    %v450 = vpop.f32.mrf.mxu0
    %v451 = vadd.f32 %v121, %v450
    %v452 = vpop.f32.mrf.mxu0
    %v453 = vadd.f32 %v121, %v452
    %454 = vdwg.mxu0
    %455 = vmatpush.bf16.msra.mxu0 %v360
    %456 = vmatpush.bf16.msra.mxu0 %v359
    %457 = vmatpush.bf16.msra.mxu0 %v358
    %458 = vmatpush.bf16.msra.mxu0 %v357
    %459 = vmatpush.bf16.msra.mxu0 %v356
    %460 = vmatpush.bf16.msra.mxu0 %v355
    %461 = vmatpush.bf16.msra.mxu0 %v354
    %462 = vmatpush.bf16.msra.mxu0 %v353
    %463 = vmatmul.bf16.gmra.mxu0 %v142
    %v464 = vpop.f32.mrf.mxu0
    %v465 = vadd.f32 %v451, %v464
    %v466 = vpop.f32.mrf.mxu0
    %v467 = vadd.f32 %v453, %v466
    %468 = vdwg.mxu0
    %469 = vmatpush.bf16.msra.mxu0 %v368
    %470 = vmatpush.bf16.msra.mxu0 %v367
    %471 = vmatpush.bf16.msra.mxu0 %v366
    %472 = vmatpush.bf16.msra.mxu0 %v365
    %473 = vmatpush.bf16.msra.mxu0 %v364
    %474 = vmatpush.bf16.msra.mxu0 %v363
    %475 = vmatpush.bf16.msra.mxu0 %v362
    %476 = vmatpush.bf16.msra.mxu0 %v361
    %477 = vmatmul.bf16.gmra.mxu0 %v143
    %v478 = vpop.f32.mrf.mxu0
    %v479 = vadd.f32 %v465, %v478
    %v480 = vpop.f32.mrf.mxu0
    %v481 = vadd.f32 %v467, %v480
    %482 = vdwg.mxu0
    %483 = vmatpush.bf16.msra.mxu0 %v376
    %484 = vmatpush.bf16.msra.mxu0 %v375
    %485 = vmatpush.bf16.msra.mxu0 %v374
    %486 = vmatpush.bf16.msra.mxu0 %v373
    %487 = vmatpush.bf16.msra.mxu0 %v372
    %488 = vmatpush.bf16.msra.mxu0 %v371
    %489 = vmatpush.bf16.msra.mxu0 %v370
    %490 = vmatpush.bf16.msra.mxu0 %v369
    %491 = vmatmul.bf16.gmra.mxu0 %v144
    %v492 = vpop.f32.mrf.mxu0
    %v493 = vadd.f32 %v479, %v492
    %v494 = vpop.f32.mrf.mxu0
    %v495 = vadd.f32 %v481, %v494
    %496 = vdwg.mxu0
    %497 = vmatpush.bf16.msra.mxu0 %v384
    %498 = vmatpush.bf16.msra.mxu0 %v383
    %499 = vmatpush.bf16.msra.mxu0 %v382
    %500 = vmatpush.bf16.msra.mxu0 %v381
    %501 = vmatpush.bf16.msra.mxu0 %v380
    %502 = vmatpush.bf16.msra.mxu0 %v379
    %503 = vmatpush.bf16.msra.mxu0 %v378
    %504 = vmatpush.bf16.msra.mxu0 %v377
    %505 = vmatmul.bf16.gmra.mxu0 %v145
    %v506 = vpop.f32.mrf.mxu0
    %v507 = vadd.f32 %v493, %v506
    %v508 = vpop.f32.mrf.mxu0
    %v509 = vadd.f32 %v495, %v508
    %510 = vdwg.mxu0
    %511 = vmatpush.bf16.msra.mxu0 %v392
    %512 = vmatpush.bf16.msra.mxu0 %v391
    %513 = vmatpush.bf16.msra.mxu0 %v390
    %514 = vmatpush.bf16.msra.mxu0 %v389
    %515 = vmatpush.bf16.msra.mxu0 %v388
    %516 = vmatpush.bf16.msra.mxu0 %v387
    %517 = vmatpush.bf16.msra.mxu0 %v386
    %518 = vmatpush.bf16.msra.mxu0 %v385
    %519 = vmatmul.bf16.gmra.mxu0 %v146
    %v520 = vpop.f32.mrf.mxu0
    %v521 = vadd.f32 %v507, %v520
    %v522 = vpop.f32.mrf.mxu0
    %v523 = vadd.f32 %v509, %v522
    %524 = vdwg.mxu0
    %vm525 = vcmask 130048
    %526 = vst.msk [vmem:[#allocation2] sm:$0xff] %vm525, %v521
    %527 = vst.msk [vmem:[#allocation2 + $0x8] sm:$0xff] %vm525, %v523
    %v528 = vlaneseq
    %v529 = vand.u32 %v528, 127
    %v530 = vsel %vm525, %v521, -inf
    %531 = vmax.xlane.f32.xlu0 %v530
    %v532 = vpop.xlane.xlu0 %531
    %v533 = vsel %vm525, %v523, -inf
    %534 = vmax.xlane.f32.xlu0 %v533
    %v535 = vpop.xlane.xlu0 %534
    %vm536 = vcmp.eq.f32.partialorder %v521, %v532
    %vm537 = vcmp.eq.f32.partialorder %v523, %v535
    %v538 = vsel %vm536, %v529, 16
    %v539 = vsel %vm537, %v529, 16
    %v540 = vsel %vm525, %v538, 2147483647
    %v541 = vand.u32 %v540, 65535
    %v542 = vshra.s32 %v540, 16
    %v543 = vcvt.s32.f32 %v541
    %v544 = vcvt.s32.f32 %v542
    %545 = vmin.xlane.f32.xlu0 %v544
    %v546 = vpop.xlane.xlu0 %545
    %vm547 = vcmp.eq.f32.partialorder %v544, %v546
    %v548 = vsel %vm547, %v543, inf
    %549 = vmin.xlane.f32.xlu0 %v548
    %v550 = vpop.xlane.xlu0 %549
    %v551 = vcvt.f32.s32 %v550
    %v552 = vcvt.f32.s32 %v546
    %v553 = vshll.u32 %v552, 16
    %v554 = vadd.s32 %v553, %v551
    %v555 = vsel %vm525, %v539, 2147483647
    %v556 = vand.u32 %v555, 65535
    %v557 = vshra.s32 %v555, 16
    %v558 = vcvt.s32.f32 %v556
    %v559 = vcvt.s32.f32 %v557
    %560 = vmin.xlane.f32.xlu0 %v559
    %v561 = vpop.xlane.xlu0 %560
    %vm562 = vcmp.eq.f32.partialorder %v559, %v561
    %v563 = vsel %vm562, %v558, inf
    %564 = vmin.xlane.f32.xlu0 %v563
    %v565 = vpop.xlane.xlu0 %564
    %v566 = vcvt.f32.s32 %v565
    %v567 = vcvt.f32.s32 %v561
    %v568 = vshll.u32 %v567, 16
    %v569 = vadd.s32 %v568, %v566
    %vm570 = vcmask 7168
    %571 = vst.msk [vmem:[%s4] sm:$0xff] %vm570, %v554
    %572 = vst.msk [vmem:[%s4 + $0x8] sm:$0xff] %vm570, %v569
    // Predicated region
    $region14: #{tpu_custom_call.1} parent=1 // pred_check
      _
    $region15: #{tpu_custom_call.1} parent=1 // pred_check_branch
      %574 = sbr.rel (0) target = $region17
    $region16: #{tpu_custom_call.1} parent=1 // pred_region
      %576 = vsyncadd [#allocation3], 0
      %s577 = sshll.u32 [#allocation2], 4
      %s578 = int_to_ptr.vmem [resolvable:$true] %s577
      %s579 = sshll.u32 %s3, 4
      %s580 = int_to_ptr.hbm [resolvable:$true] %s579
      %585 = dma.vmem_to_hbm [thread:$0]  %s578, 256, %s580, [#allocation3], 128, 128, 8
    $region17: #{tpu_custom_call.1} parent=1 // pred_fallthru
      _
    // Predicated region
    $region18: #{tpu_custom_call.1} parent=1 // pred_check
      _
    $region19: #{tpu_custom_call.1} parent=1 // pred_check_branch
      %587 = sbr.rel (0) target = $region21
    $region20: #{tpu_custom_call.1} parent=1 // pred_region
      _
    $region21: #{tpu_custom_call.1} parent=1 // pred_fallthru
      _
    // Predicated region
    $region22: #{tpu_custom_call.1} parent=1 // pred_check
      _
    $region23: #{tpu_custom_call.1} parent=1 // pred_check_branch
      %589 = sbr.rel (0) target = $region25
    $region24: #{tpu_custom_call.1} parent=1 // pred_region
      %591 = dma.done [#allocation3], 256
    $region25: #{tpu_custom_call.1} parent=1 // pred_fallthru
      _
    // Predicated region
    $region26: #{tpu_custom_call.1} parent=1 // pred_check
      _
    $region27: #{tpu_custom_call.1} parent=1 // pred_check_branch
      %593 = sbr.rel (0) target = $region29
    $region28: #{tpu_custom_call.1} parent=1 // pred_region
      _
    $region29: #{tpu_custom_call.1} parent=1 // pred_fallthru
      _
    %594 = vsyncpa [#allocation3], 1

</llo_original>
